<compile_context>
chip_gen: v6e
topology: v6e:2x2x1
jax: 0.10.0
libtpu: 0.0.40
codegen_flags: <defaults>
</compile_context>

<pallas_src>
import jax
import jax.numpy as jnp
from jax.experimental import pallas as pl
from jax.experimental.pallas import tpu as pltpu

N = 2                    # real batch
C, H, W = 3, 7, 7
KH, KW = 7, 7
D_IN = C * KH * KW       # 147 fused contraction features
H1 = 32                  # conv output channels (== flattened feature dim)
H2 = 4                   # linear output features (classes)
M_PAD = 8                # batch rows padded to one f32 sublane tile
K_PAD = 256              # contraction (147 features + 1 bias column) padded to 256
NPAD = 128               # class lanes padded to 128


def model_kernel(x_ref, wc_ref, pred_ref):
    # x_ref:  (M_PAD, K_PAD) f32  rows [0,N) real; column D_IN == 1.0 (bias column)
    # wc_ref: (K_PAD, NPAD)  f32  rows [0,D_IN) fused conv+linear weights,
    #                             row D_IN = fused bias (-1e30 for padded classes)
    # pred_ref: (1, NPAD) int32   argmax-over-batch index per class
    logits = jnp.dot(x_ref[...], wc_ref[...],
                     preferred_element_type=jnp.float32)          # (M_PAD, NPAD)

    # Log-domain softmax score: score = logit - logsumexp(row).  Monotone in the
    # softmax probability (exp is globally monotone), so comparing scores across
    # batch rows gives exactly softmax(x, 1).max(0)[1].
    m = jnp.max(logits, axis=1, keepdims=True)
    lse = m + jnp.log(jnp.sum(jnp.exp(logits - m), axis=1, keepdims=True))
    scores = logits - lse

    # Mask zero-padded batch rows so they can never win the cross-row argmax.
    row_idx = jax.lax.broadcasted_iota(jnp.int32, scores.shape, 0)
    scores = jnp.where(row_idx < N, scores, -jnp.inf)

    # argmax over the batch axis, first-occurrence tie-breaking (iota/where/min).
    col_max = jnp.max(scores, axis=0, keepdims=True)
    cand = jnp.where(scores == col_max, row_idx, jnp.int32(M_PAD))
    pred_ref[...] = jnp.min(cand, axis=0, keepdims=True)          # (1,128) lane-dense


def build_fused_weights(conv_w, conv_b, lin_w, lin_b):
    """One-time weight-side fusion + padding; reused by every forward call."""
    w1 = conv_w.reshape(H1, D_IN).T.astype(jnp.float32)           # (147, 32)
    w2 = lin_w.T.astype(jnp.float32)                              # (32, 4)
    wc = w1 @ w2                                                  # (147, 4)
    # conv(x + 1) == x@W1 + 1s@W1 + b1 ; pushed through the Linear stage:
    bc = wc.sum(axis=0) + conv_b.astype(jnp.float32) @ w2 \
         + lin_b.astype(jnp.float32)                              # (4,)

    wc_pad = jnp.zeros((K_PAD, NPAD), jnp.float32)
    wc_pad = wc_pad.at[:D_IN, :H2].set(wc)
    # Bias lives in K-row D_IN (activated by x's constant-1 column).  Padded
    # classes get -1e30 so their scores can never win.
    bias_row = jnp.full((NPAD,), -1e30, jnp.float32).at[:H2].set(bc)
    wc_pad = wc_pad.at[D_IN, :].set(bias_row)
    return wc_pad


@jax.jit
def model_forward(x_nchw, wc_pad):
    # Per-call work: flatten x, append the constant-1 bias column, zero-pad to an
    # exact (8, 256) f32 tile.
    x_flat = x_nchw.reshape(N, D_IN).astype(jnp.float32)
    x_aug = jnp.concatenate([x_flat, jnp.ones((N, 1), jnp.float32)], axis=1)
    x_pad = jnp.pad(x_aug, ((0, M_PAD - N), (0, K_PAD - (D_IN + 1))))

    pred = pl.pallas_call(
        model_kernel,
        out_shape=jax.ShapeDtypeStruct((1, NPAD), jnp.int32),
        in_specs=[
            pl.BlockSpec(memory_space=pltpu.MemorySpace.VMEM),    # x_pad
            pl.BlockSpec(memory_space=pltpu.MemorySpace.VMEM),    # fused weights
        ],
        out_specs=pl.BlockSpec(memory_space=pltpu.MemorySpace.VMEM),
        compiler_params=pltpu.CompilerParams(
            allow_input_fusion=[True, False]),
    )(x_pad, wc_pad)

    # TODO(synk): torch returns int64 argmax indices; we return int32 (TPU-native).
    return pred[0, :H2]  # shape (4,), batch index per class


if __name__ == "__main__":
    key = jax.random.PRNGKey(0)
    kx, kw1, kb1, kw2, kb2 = jax.random.split(key, 5)

    # Deterministic parameter init (torch-style uniform(-1/sqrt(fan_in), ...)).
    fan1 = C * KH * KW
    conv_w = jax.random.uniform(kw1, (H1, C, KH, KW), jnp.float32,
                                -1.0 / fan1 ** 0.5, 1.0 / fan1 ** 0.5)
    conv_b = jax.random.uniform(kb1, (H1,), jnp.float32,
                                -1.0 / fan1 ** 0.5, 1.0 / fan1 ** 0.5)
    fan2 = H1
    lin_w = jax.random.uniform(kw2, (H2, H1), jnp.float32,
                               -1.0 / fan2 ** 0.5, 1.0 / fan2 ** 0.5)
    lin_b = jax.random.uniform(kb2, (H2,), jnp.float32,
                               -1.0 / fan2 ** 0.5, 1.0 / fan2 ** 0.5)

    # Input: NCHW = (2, 3, 7, 7) as required by the module's shape constraints.
    x = jax.random.normal(kx, (N, C, H, W), jnp.float32)

    # One-time weight fold (hoisted out of the per-call path).
    wc_pad = jax.block_until_ready(build_fused_weights(conv_w, conv_b, lin_w, lin_b))

    pred = model_forward(x, wc_pad)
    jax.block_until_ready(pred)

    # Pure-JAX f32 reference of the original PyTorch forward.
    conv_out = jnp.einsum('nchw,ochw->no', x + 1.0, conv_w) + conv_b    # (2, 32)
    logits = conv_out @ lin_w.T + lin_b                                 # (2, 4)
    ref_pred = jnp.argmax(jax.nn.softmax(logits, axis=1), axis=0)       # (4,)

    assert pred.shape == (H2,)
    assert bool(jnp.all((pred >= 0) & (pred < N)))
    assert bool(jnp.array_equal(pred.astype(jnp.int32), ref_pred.astype(jnp.int32)))
    print("KERNEL_OK")
</pallas_src>

<mosaic_0001>
module attributes {stable_mosaic.version = 11 : i64} {
  func.func @model_kernel(%arg0: memref<8x256xf32, #tpu.memory_space<vmem>>, %arg1: memref<256x128xf32, #tpu.memory_space<vmem>>, %arg2: memref<1x128xi32, #tpu.memory_space<vmem>>) attributes {dimension_semantics = [], scalar_prefetch = 0 : i64, scratch_operands = 0 : i64, tpu.core_type = #tpu.core_type<tc>} {
    %c0 = arith.constant 0 : index
    %c0_0 = arith.constant 0 : index
    %0 = vector.load %arg0[%c0, %c0_0] : memref<8x256xf32, #tpu.memory_space<vmem>>, vector<8x256xf32>
    %c0_1 = arith.constant 0 : index
    %c0_2 = arith.constant 0 : index
    %1 = vector.load %arg1[%c0_1, %c0_2] : memref<256x128xf32, #tpu.memory_space<vmem>>, vector<256x128xf32>
    %cst = arith.constant dense<0.000000e+00> : vector<8x128xf32>
    %2 = tpu.matmul %0, %1, %cst {dimension_numbers = #tpu.dot_dimension_numbers<[1], [0], [0], [1], [0, 0, 1, 1], [], []>} : vector<8x256xf32>, vector<256x128xf32>, vector<8x128xf32> -> vector<8x128xf32>
    %cst_3 = arith.constant dense<0xFF800000> : vector<8xf32>
    %3 = vector.multi_reduction <maximumf>, %2, %cst_3 [1] : vector<8x128xf32> to vector<8xf32>
    %4 = vector.shape_cast %3 : vector<8xf32> to vector<8x1xf32>
    %5 = vector.broadcast %4 : vector<8x1xf32> to vector<8x128xf32>
    %6 = arith.subf %2, %5 : vector<8x128xf32>
    %7 = math.exp %6 : vector<8x128xf32>
    %cst_4 = arith.constant dense<0.000000e+00> : vector<8xf32>
    %8 = vector.multi_reduction <add>, %7, %cst_4 [1] : vector<8x128xf32> to vector<8xf32>
    %9 = vector.shape_cast %8 : vector<8xf32> to vector<8x1xf32>
    %10 = math.log %9 : vector<8x1xf32>
    %11 = arith.addf %4, %10 : vector<8x1xf32>
    %12 = vector.broadcast %11 : vector<8x1xf32> to vector<8x128xf32>
    %13 = arith.subf %2, %12 : vector<8x128xf32>
    %14 = tpu.iota {dimensions = array<i32: 0>} : vector<8x128xi32>
    %c2_i32 = arith.constant 2 : i32
    %15 = vector.broadcast %c2_i32 : i32 to vector<8x128xi32>
    %16 = arith.cmpi slt, %14, %15 : vector<8x128xi32>
    %cst_5 = arith.constant 0xFF800000 : f32
    %17 = vector.broadcast %cst_5 : f32 to vector<8x128xf32>
    %18 = arith.select %16, %13, %17 : vector<8x128xi1>, vector<8x128xf32>
    %cst_6 = arith.constant dense<0xFF800000> : vector<128xf32>
    %19 = vector.multi_reduction <maximumf>, %18, %cst_6 [0] : vector<8x128xf32> to vector<128xf32>
    %20 = vector.shape_cast %19 : vector<128xf32> to vector<1x128xf32>
    %21 = vector.broadcast %20 : vector<1x128xf32> to vector<8x128xf32>
    %22 = arith.cmpf oeq, %18, %21 : vector<8x128xf32>
    %c8_i32 = arith.constant 8 : i32
    %23 = vector.broadcast %c8_i32 : i32 to vector<8x128xi32>
    %24 = arith.select %22, %14, %23 : vector<8x128xi1>, vector<8x128xi32>
    %cst_7 = arith.constant dense<2147483647> : vector<128xi32>
    %25 = vector.multi_reduction <minsi>, %24, %cst_7 [0] : vector<8x128xi32> to vector<128xi32>
    %26 = vector.shape_cast %25 : vector<128xi32> to vector<1x128xi32>
    %c0_8 = arith.constant 0 : index
    %c0_9 = arith.constant 0 : index
    %27 = vector.load %arg2[%c0_8, %c0_9] : memref<1x128xi32, #tpu.memory_space<vmem>>, vector<1x128xi32>
    tpu.vector_store %arg2[%c0_8, %c0_9], %26 {strides = array<i32>} : memref<1x128xi32, #tpu.memory_space<vmem>>, vector<1x128xi32>,
    return
  }
}

</mosaic_0001>

<llo_original>
// kernel: model_forward.2
$region0: #{model_forward.2}
  #allocation0 [shape = 'u32[]', space=smem, size = 0x4, offset = 0x4, fixed_abs, tag = 'smem constant byte address 0x4 - core index']
  #allocation1 [shape = 'u32[144,128]{1,0:T(1,128)}', space=vmem, size = 0x12000, scoped, tag = 'internal scratch']
  #allocation2 [shape = 'u32[2048]{0}', space=vmem, size = 0x2000, scoped, tag = 'scoped memory for model_forward.2']
  #allocation3 [shape = 'u32[2048]{0}', space=vmem, size = 0x2000, scoped, tag = 'scoped memory for model_forward.2']
  #allocation4 [shape = 'u32[2048]{0}', space=vmem, size = 0x2000, scoped, tag = 'scoped memory for model_forward.2']
  #allocation5 [shape = 'u32[2048]{0}', space=vmem, size = 0x2000, scoped, tag = 'scoped memory for model_forward.2']
  #allocation6 [shape = 'u32[2048]{0}', space=vmem, size = 0x2000, scoped, tag = 'scoped memory for model_forward.2']
  %s0 = inlined_call_operand.hbm [shape: f32[256,128], index: 0, kind: input, shape index: {}]
  %s1 = inlined_call_operand.vmem [shape: f32[2,147], index: 1, kind: input, shape index: {}]
  %s2 = inlined_call_operand.<no memory space> [shape: f32[], index: 2, kind: input, shape index: {}]
  %s3 = inlined_call_operand.<no memory space> [shape: s32[], index: 3, kind: input, shape index: {}]
  %s4 = inlined_call_operand.<no memory space> [shape: f32[], index: 4, kind: input, shape index: {}]
  %s5 = inlined_call_operand.<no memory space> [shape: s32[], index: 5, kind: input, shape index: {}]
  %s6 = inlined_call_operand.vmem [shape: s32[1,128], index: 6, kind: output, shape index: {}]
  %s7 = sld [smem:[#allocation0]]
  $region22: #{model_forward.2} parent=0
    _
  %s9 = ssub.s32 1, %s7
  %s10 = scalar_select 0, %s9, %s7
  %v11 = vstv %s2
  %v12 = vstv %s3
  %v13 = vstv %s4
  %v14 = vstv %s5
  $region1: #{model_forward.2} parent=0
    #allocation7 [shape = 'u8[131072]{0}', space=vmem, size = 0x20000, scoped, tag = 'input window, operand 1, single buffered']
    #allocation8 [shape = 's32[1]{0}', space=sflag, size = 0x4, scoped, tag = 'scoped memory for model_forward.2']
    #allocation9 [shape = 'u8[8192]{0}', space=vmem, size = 0x2000, dematerialized = true, scoped, tag = 'FusionAdapter Buffer %fusion.1 = f32[8,256]{1,0:T(8,128)} fusion(%param_1.19, %param_2.13, %param_3.12, %param_4.13, %param_5.8), kind=kLoop, calls=%fused_computation.1.clone, metadata={op_name="jit(model_forward)/jit(_pad)/pad" stack_frame_id=9}']
    %15 = vsyncpa [#allocation8], 0
    // Predicated region
    $region2: #{model_forward.2} parent=1 // pred_check
      _
    $region3: #{model_forward.2} parent=1 // pred_check_branch
      %17 = sbr.rel (0) target = $region5
    $region4: #{model_forward.2} parent=1 // pred_region
      _
    $region5: #{model_forward.2} parent=1 // pred_fallthru
      _
    // Predicated region
    $region6: #{model_forward.2} parent=1 // pred_check
      _
    $region7: #{model_forward.2} parent=1 // pred_check_branch
      %19 = sbr.rel (0) target = $region9
    $region8: #{model_forward.2} parent=1 // pred_region
      %s21 = ssub.s32 4096, 4096
      %22 = vsyncadd [#allocation8], %s21
      %s23 = sshll.u32 [#allocation7], 4
      %s24 = int_to_ptr.vmem [resolvable:$true] %s23
      %29 = dma.hbm_to_vmem [thread:$0]  %s0, 4096, %s24, [#allocation8], 128, 128, 8
    $region9: #{model_forward.2} parent=1 // pred_fallthru
      _
    // Predicated region
    $region10: #{model_forward.2} parent=1 // pred_check
      _
    $region11: #{model_forward.2} parent=1 // pred_check_branch
      %31 = sbr.rel (0) target = $region13
    $region12: #{model_forward.2} parent=1 // pred_region
      %32 = dma.done [#allocation8], 4096
    $region13: #{model_forward.2} parent=1 // pred_fallthru
      _
    %v33 = vld [vmem:[%s1] sm:$0x3]
    %v34 = vlaneseq
    %v35 = vshrl.u32 %v34, 7
    %vm37 = vcmp.lt.s32.totalorder %v35, 2
    %v38 = vsel %vm37, %v33, %v11
    %v39 = vlaneseq
    %v40 = vand.u32 %v39, 127
    %vm42 = vcmp.lt.s32.totalorder %v40, 147
    %v43 = vsel %vm42, %v38, %v11
    %v44 = vlaneseq
    %v45 = vshrl.u32 %v44, 7
    %48 = xla_tuple %v45, %v14
    %49 = xla_tuple %48
    %vm50 = vcmp.lt.s32.totalorder %v45, %v14
    %v51 = vsel %vm50, 1, 0
    %52 = xla_tuple %v51
    %v53 = vlaneseq
    %v54 = vand.u32 %v53, 127
    %57 = xla_tuple %v54, %v12
    %58 = xla_tuple %57
    %vm59 = vcmp.lt.s32.totalorder %v54, %v12
    %v60 = vsel %vm59, 1, 0
    %61 = xla_tuple %v60
    %v62 = vand.u32 %v51, %v60
    %63 = xla_tuple %v51, %v43, %v13
    %64 = xla_tuple %63
    %v65 = vsel %vm50, %v43, %v13
    %66 = xla_tuple %v65
    %67 = xla_tuple %v62, %v65, %v13
    %68 = xla_tuple %67
    %vm69 = vcmp.ne.s32.totalorder %v62, 0
    %v70 = vsel %vm69, %v65, %v13
    %71 = xla_tuple %v70
    %s73 = ssub.s32 256, 1
    %74 = vst [vmem:[#allocation9] sm:%s73] %v70
    %s75 = scalar_lea.vmem %s1, 2
    %v76 = vld [vmem:[%s75] sm:$0x3]
    %v77 = vlaneseq
    %v78 = vshrl.u32 %v77, 7
    %vm80 = vcmp.lt.s32.totalorder %v78, 2
    %v81 = vsel %vm80, %v76, %v11
    %v82 = vlaneseq
    %v83 = vand.u32 %v82, 127
    %v84 = vadd.s32 %v83, 128
    %vm85 = vcmp.lt.s32.totalorder %v84, 147
    %v86 = vsel %vm85, %v81, %v11
    %v87 = vlaneseq
    %v88 = vshrl.u32 %v87, 7
    %91 = xla_tuple %v88, %v14
    %92 = xla_tuple %91
    %vm93 = vcmp.lt.s32.totalorder %v88, %v14
    %v94 = vsel %vm93, 1, 0
    %95 = xla_tuple %v94
    %v96 = vlaneseq
    %v97 = vand.u32 %v96, 127
    %v99 = vadd.s32 %v97, 128
    %100 = xla_tuple %v99, %v12
    %101 = xla_tuple %100
    %vm102 = vcmp.lt.s32.totalorder %v99, %v12
    %v103 = vsel %vm102, 1, 0
    %104 = xla_tuple %v103
    %v105 = vand.u32 %v94, %v103
    %106 = xla_tuple %v94, %v86, %v13
    %107 = xla_tuple %106
    %v108 = vsel %vm93, %v86, %v13
    %109 = xla_tuple %v108
    %110 = xla_tuple %v105, %v108, %v13
    %111 = xla_tuple %110
    %vm112 = vcmp.ne.s32.totalorder %v105, 0
    %v113 = vsel %vm112, %v108, %v13
    %114 = xla_tuple %v113
    %s115 = scalar_lea.vmem [#allocation9], 8
    %s117 = ssub.s32 256, 1
    %118 = vst [vmem:[%s115] sm:%s117] %v113
    %v119 = vld [vmem:[#allocation9] sm:$0xff]
    %v120 = vld [vmem:[#allocation9 + $0x8] sm:$0xff]
    %v121 = vld [vmem:[#allocation7] sm:$0xff]
    %v122 = vld [vmem:[#allocation7 + $0x8] sm:$0xff]
    %v123 = vld [vmem:[#allocation7 + $0x10] sm:$0xff]
    %v124 = vld [vmem:[#allocation7 + $0x18] sm:$0xff]
    %v125 = vld [vmem:[#allocation7 + $0x20] sm:$0xff]
    %v126 = vld [vmem:[#allocation7 + $0x28] sm:$0xff]
    %v127 = vld [vmem:[#allocation7 + $0x30] sm:$0xff]
    %v128 = vld [vmem:[#allocation7 + $0x38] sm:$0xff]
    %v129 = vld [vmem:[#allocation7 + $0x40] sm:$0xff]
    %v130 = vld [vmem:[#allocation7 + $0x48] sm:$0xff]
    %v131 = vld [vmem:[#allocation7 + $0x50] sm:$0xff]
    %v132 = vld [vmem:[#allocation7 + $0x58] sm:$0xff]
    %v133 = vld [vmem:[#allocation7 + $0x60] sm:$0xff]
    %v134 = vld [vmem:[#allocation7 + $0x68] sm:$0xff]
    %v135 = vld [vmem:[#allocation7 + $0x70] sm:$0xff]
    %v136 = vld [vmem:[#allocation7 + $0x78] sm:$0xff]
    %v137 = vld [vmem:[#allocation7 + $0x80] sm:$0xff]
    %v138 = vld [vmem:[#allocation7 + $0x88] sm:$0xff]
    %v139 = vld [vmem:[#allocation7 + $0x90] sm:$0xff]
    %v140 = vld [vmem:[#allocation7 + $0x98] sm:$0xff]
    %v141 = vld [vmem:[#allocation7 + $0xa0] sm:$0xff]
    %v142 = vld [vmem:[#allocation7 + $0xa8] sm:$0xff]
    %v143 = vld [vmem:[#allocation7 + $0xb0] sm:$0xff]
    %v144 = vld [vmem:[#allocation7 + $0xb8] sm:$0xff]
    %v145 = vld [vmem:[#allocation7 + $0xc0] sm:$0xff]
    %v146 = vld [vmem:[#allocation7 + $0xc8] sm:$0xff]
    %v147 = vld [vmem:[#allocation7 + $0xd0] sm:$0xff]
    %v148 = vld [vmem:[#allocation7 + $0xd8] sm:$0xff]
    %v149 = vld [vmem:[#allocation7 + $0xe0] sm:$0xff]
    %v150 = vld [vmem:[#allocation7 + $0xe8] sm:$0xff]
    %v151 = vld [vmem:[#allocation7 + $0xf0] sm:$0xff]
    %v152 = vld [vmem:[#allocation7 + $0xf8] sm:$0xff]
    %153 = vmatprep.subr.mxu0 0.0
    %154 = vmatpush1.msra.mxu0 %v136
    %155 = vmatprep.subr.mxu0 0.0
    %156 = vmatpush1.msra.mxu0 %v135
    %157 = vmatprep.subr.mxu0 0.0
    %158 = vmatpush1.msra.mxu0 %v134
    %159 = vmatprep.subr.mxu0 0.0
    %160 = vmatpush1.msra.mxu0 %v133
    %161 = vmatprep.subr.mxu0 0.0
    %162 = vmatpush1.msra.mxu0 %v132
    %163 = vmatprep.subr.mxu0 0.0
    %164 = vmatpush1.msra.mxu0 %v131
    %165 = vmatprep.subr.mxu0 0.0
    %166 = vmatpush1.msra.mxu0 %v130
    %167 = vmatprep.subr.mxu0 0.0
    %168 = vmatpush1.msra.mxu0 %v129
    %169 = vmatprep.subr.mxu0 0.0
    %170 = vmatpush1.msra.mxu0 %v128
    %171 = vmatprep.subr.mxu0 0.0
    %172 = vmatpush1.msra.mxu0 %v127
    %173 = vmatprep.subr.mxu0 0.0
    %174 = vmatpush1.msra.mxu0 %v126
    %175 = vmatprep.subr.mxu0 0.0
    %176 = vmatpush1.msra.mxu0 %v125
    %177 = vmatprep.subr.mxu0 0.0
    %178 = vmatpush1.msra.mxu0 %v124
    %179 = vmatprep.subr.mxu0 0.0
    %180 = vmatpush1.msra.mxu0 %v123
    %181 = vmatprep.subr.mxu0 0.0
    %182 = vmatpush1.msra.mxu0 %v122
    %183 = vmatprep.subr.mxu0 0.0
    %184 = vmatpush1.msra.mxu0 %v121
    %185 = vmatprep.subr.mxu0 0.0
    %186 = vmatpush2.msra.mxu0 %v152
    %187 = vmatprep.subr.mxu0 0.0
    %188 = vmatpush2.msra.mxu0 %v151
    %189 = vmatprep.subr.mxu0 0.0
    %190 = vmatpush2.msra.mxu0 %v150
    %191 = vmatprep.subr.mxu0 0.0
    %192 = vmatpush2.msra.mxu0 %v149
    %193 = vmatprep.subr.mxu0 0.0
    %194 = vmatpush2.msra.mxu0 %v148
    %195 = vmatprep.subr.mxu0 0.0
    %196 = vmatpush2.msra.mxu0 %v147
    %197 = vmatprep.subr.mxu0 0.0
    %198 = vmatpush2.msra.mxu0 %v146
    %199 = vmatprep.subr.mxu0 0.0
    %200 = vmatpush2.msra.mxu0 %v145
    %201 = vmatprep.subr.mxu0 0.0
    %202 = vmatpush2.msra.mxu0 %v144
    %203 = vmatprep.subr.mxu0 0.0
    %204 = vmatpush2.msra.mxu0 %v143
    %205 = vmatprep.subr.mxu0 0.0
    %206 = vmatpush2.msra.mxu0 %v142
    %207 = vmatprep.subr.mxu0 0.0
    %208 = vmatpush2.msra.mxu0 %v141
    %209 = vmatprep.subr.mxu0 0.0
    %210 = vmatpush2.msra.mxu0 %v140
    %211 = vmatprep.subr.mxu0 0.0
    %212 = vmatpush2.msra.mxu0 %v139
    %213 = vmatprep.subr.mxu0 0.0
    %214 = vmatpush2.msra.mxu0 %v138
    %215 = vmatprep.subr.mxu0 0.0
    %216 = vmatpush2.msra.mxu0 %v137
    %217 = vmatprep.mubr.f32.mxu0 %v120
    %218 = vmatmul.mubr.f32.gmra.mxu0 %v119
    %v219 = vpop.f32.mrf.mxu0
    %v220 = vadd.f32 0.0, %v219
    %v221 = vpop.f32.mrf.mxu0
    %222 = vdwg.mxu0
    %223 = vmax.xlane.f32.xlu0 %v220
    %v224 = vpop.xlane.xlu0 %223
    %v225 = vsub.f32 %v220, %v224
    %v226 = vmul.f32 %v225, 1.442695
    %v227 = vpow.pop %v226
    %228 = vadd.xlane.f32.xlu0 %v227
    %v229 = vpop.xlane.xlu0 %228
    %v230 = vlog2.pop %v229
    %v231 = vmul.f32 %v230, 0.6931472
    %v232 = vadd.f32 %v224, %v231
    %v233 = vsub.f32 %v220, %v232
    %v234 = vlaneseq
    %v235 = vshrl.u32 %v234, 7
    %vm236 = vcmp.lt.s32.totalorder %v235, 2
    %v237 = vsel %vm236, %v233, -inf
    %v238 = vrot.slane %v237, 4
    %v239 = vmax.f32 %v237, %v238
    %v240 = vrot.slane %v239, 2
    %v241 = vmax.f32 %v239, %v240
    %v242 = vrot.slane %v241, 1
    %v243 = vmax.f32 %v241, %v242
    %vm244 = vcmp.eq.f32.partialorder %v237, %v243
    %v245 = vsel %vm244, %v235, 8
    %v246 = vrot.slane %v245, 4
    %vm247 = vcmp.lt.s32.totalorder %v245, %v246
    %v248 = vsel %vm247, %v245, %v246
    %v249 = vrot.slane %v248, 2
    %vm250 = vcmp.lt.s32.totalorder %v248, %v249
    %v251 = vsel %vm250, %v248, %v249
    %v252 = vrot.slane %v251, 1
    %vm253 = vcmp.lt.s32.totalorder %v251, %v252
    %v254 = vsel %vm253, %v251, %v252
    %255 = vst [vmem:[%s6] sm:$0x1] %v254
    // Predicated region
    $region14: #{model_forward.2} parent=1 // pred_check
      _
    $region15: #{model_forward.2} parent=1 // pred_check_branch
      %257 = sbr.rel (0) target = $region17
    $region16: #{model_forward.2} parent=1 // pred_region
      _
    $region17: #{model_forward.2} parent=1 // pred_fallthru
      _
    // Predicated region
    $region18: #{model_forward.2} parent=1 // pred_check
      _
    $region19: #{model_forward.2} parent=1 // pred_check_branch
      %259 = sbr.rel (0) target = $region21
    $region20: #{model_forward.2} parent=1 // pred_region
      _
    $region21: #{model_forward.2} parent=1 // pred_fallthru
      _
    %260 = vsyncpa [#allocation8], 1

</llo_original>
